<compile_context>
chip_gen: v5e
topology: v5e:2x2
jax: 0.10.0
libtpu: 0.0.40
codegen_flags: <defaults>
</compile_context>

<pallas_src>
import functools

import jax
import jax.numpy as jnp
from jax.experimental import pallas as pl
from jax.experimental.pallas import tpu as pltpu


def _rfa_block_kernel(x_ref, dw_ref, wblk_ref, shift_ref, out_ref,
                      xpad_ref, accs_ref, *, H, W, C, dilations, pad, tile_h):
    # x_ref    : (1, H, W*C)          lane-packed NHWC input, batch element n
    # dw_ref   : (3*9, W*C)           depthwise weights pre-tiled over W
    # wblk_ref : (3*W*C, W*Cout)      block-diagonal pointwise weight (BN folded)
    # shift_ref: (1, W*Cout)          conv bias + BN shift, tiled over W
    # out_ref  : (1, tile_h, W*Cout)  lane-dense output row tile
    # xpad_ref : (H+2p, (W+2p)*C)     VMEM scratch: zero-padded packed image
    # accs_ref : (tile_h, 3*W*C)      VMEM scratch: stacked branch accumulators
    WC = W * C
    Hp = H + 2 * pad
    WpC = (W + 2 * pad) * C
    t = pl.program_id(1)

    # Build the padded image once per batch element (t == 0) and reuse it for
    # the remaining row tiles.  Only the halo strips are zeroed; the interior
    # is fully overwritten by x.  Safe with a "parallel" n axis: each core
    # owns complete n sweeps and its own scratch.
    @pl.when(t == 0)
    def _():
        xpad_ref[0:pad, :] = jnp.zeros((pad, WpC), jnp.float32)
        xpad_ref[pad + H:Hp, :] = jnp.zeros((pad, WpC), jnp.float32)
        xpad_ref[pad:pad + H, 0:pad * C] = jnp.zeros((H, pad * C), jnp.float32)
        xpad_ref[pad:pad + H, (pad + W) * C:WpC] = jnp.zeros((H, pad * C),
                                                             jnp.float32)
        xpad_ref[pad:pad + H, pad * C:(pad + W) * C] = x_ref[0].astype(
            jnp.float32)

    row_base = pl.multiple_of(t * tile_h, tile_h)

    # Depthwise 27-tap MAC on lane-packed (tile_h, W*C) slabs.
    for di, d in enumerate(dilations):
        acc = None
        for ki in range(3):
            r0 = row_base + (pad + (ki - 1) * d)
            for kj in range(3):
                c0 = (pad + (kj - 1) * d) * C
                patch = xpad_ref[pl.ds(r0, tile_h), pl.ds(c0, WC)]
                tap = di * 9 + ki * 3 + kj
                term = patch * dw_ref[tap:tap + 1, :]
                acc = term if acc is None else acc + term
        accs_ref[:, di * WC:(di + 1) * WC] = acc

    # Single fused pointwise matmul (K = 3*W*C); the block-diagonal RHS makes
    # the result land directly in the lane-dense (tile_h, W*Cout) packing.
    # TODO(synk): feed bf16 operands here at production channel counts (kept
    #   f32 for exactness at this toy size).
    y = jnp.dot(accs_ref[...], wblk_ref[...],
                preferred_element_type=jnp.float32)
    out_ref[0] = (y + shift_ref[...]).astype(out_ref.dtype)


def rfa_conv_block(x_nchw, dw_w, pw_w, pw_b, bn_gamma, bn_beta, bn_mean,
                   bn_var, *, dilations=(1, 2, 3), bn_eps=1e-3, tile_h=None):
    """x_nchw: (N, C, H, W) float32.  Returns (N, Cout, H, W) float32."""
    N, C, H, W = x_nchw.shape
    Cout = pw_w.shape[1]
    nb = len(dilations)
    pad = max(dilations)
    Hp = H + 2 * pad
    WC = W * C
    WpC = (W + 2 * pad) * C
    WCo = W * Cout

    if tile_h is None:
        tile_h = 8 if H % 8 == 0 else H
    assert H % tile_h == 0, "H must be divisible by the row tile"

    # NCHW -> lane-packed NHWC (N, H, W*C): channels ride the lane axis next
    # to W so the in-kernel working set is lane-dense.
    x_packed = jnp.transpose(x_nchw, (0, 2, 3, 1)).reshape(N, H, WC)

    # Fold BN (inference, running stats) + conv bias into weight / one shift.
    scale = bn_gamma / jnp.sqrt(bn_var + bn_eps)                    # (Cout,)
    pw_scaled = (pw_w * scale[None, :]).reshape(nb, C, Cout)
    shift = (pw_b - bn_mean) * scale + bn_beta                      # (Cout,)
    shift_tiled = jnp.tile(shift, W).reshape(1, WCo)

    # Depthwise weights pre-tiled over W to match the packed layout.
    dw_tiled = jnp.tile(dw_w.reshape(nb * 9, 1, C), (1, W, 1)).reshape(
        nb * 9, WC)

    # Block-diagonal pointwise weight: W copies of (C, Cout) per branch so one
    # (tile_h, 3*W*C) @ (3*W*C, W*Cout) dot yields the output in its final
    # lane-dense packing (no epilogue relayout).
    eye_w = jnp.eye(W, dtype=jnp.float32)
    w_blk = jnp.einsum("wx,dco->dwcxo", eye_w, pw_scaled).reshape(nb * WC, WCo)

    kernel = functools.partial(_rfa_block_kernel, H=H, W=W, C=C,
                               dilations=tuple(dilations), pad=pad,
                               tile_h=tile_h)

    # grid = (N, row tiles).  The x block is indexed by n only (one DMA per
    # image, reused across row tiles); the extra t steps let double-buffering
    # overlap output writeback / next image prefetch with compute.
    # TODO(synk): for production H/W where the padded image no longer fits
    #   VMEM, switch the t axis to true halo'd row tiles (manual async-copy)
    #   sized so the per-step footprint stays under v7x's 64 MiB.
    out = pl.pallas_call(
        kernel,
        out_shape=jax.ShapeDtypeStruct((N, H, WCo), jnp.float32),
        grid_spec=pltpu.PrefetchScalarGridSpec(
            num_scalar_prefetch=0,
            grid=(N, H // tile_h),
            in_specs=[
                pl.BlockSpec((1, H, WC), lambda n, t: (n, 0, 0)),
                pl.BlockSpec((nb * 9, WC), lambda n, t: (0, 0)),
                pl.BlockSpec((nb * WC, WCo), lambda n, t: (0, 0)),
                pl.BlockSpec((1, WCo), lambda n, t: (0, 0)),
            ],
            out_specs=pl.BlockSpec((1, tile_h, WCo), lambda n, t: (n, t, 0)),
            scratch_shapes=[
                pltpu.VMEM((Hp, WpC), jnp.float32),
                pltpu.VMEM((tile_h, nb * WC), jnp.float32),
            ],
        ),
        compiler_params=pltpu.CompilerParams(
            dimension_semantics=("parallel", "arbitrary"),
            vmem_limit_bytes=32 * 1024 * 1024,
        ),
    )(x_packed, dw_tiled, w_blk, shift_tiled)

    # (N, H, W*Cout) -> (N, H, W, Cout) is a free contiguous reshape; -> NCHW.
    return jnp.transpose(out.reshape(N, H, W, Cout), (0, 3, 1, 2))


def _reference(x_nchw, dw_w, pw_w, pw_b, bn_gamma, bn_beta, bn_mean, bn_var,
               *, dilations=(1, 2, 3), bn_eps=1e-3):
    """Pure-JAX reference (NHWC convs via lax.conv_general_dilated)."""
    N, C, H, W = x_nchw.shape
    x = jnp.transpose(x_nchw, (0, 2, 3, 1))
    feats = []
    for idx, d in enumerate(dilations):
        w = dw_w[idx].reshape(3, 3, 1, C)  # HWIO, depthwise
        y = jax.lax.conv_general_dilated(
            x, w, window_strides=(1, 1), padding=[(d, d), (d, d)],
            rhs_dilation=(d, d), feature_group_count=C,
            dimension_numbers=("NHWC", "HWIO", "NHWC"))
        feats.append(y)
    x4 = jnp.concatenate(feats, axis=-1)                       # (N,H,W,3C)
    y = jnp.einsum("nhwc,co->nhwo", x4, pw_w) + pw_b
    scale = bn_gamma / jnp.sqrt(bn_var + bn_eps)
    shift = bn_beta - bn_mean * scale
    y = y * scale + shift
    return jnp.transpose(y, (0, 3, 1, 2))


if __name__ == "__main__":
    N, C, H, W = 2, 4, 16, 16
    Cout = 8
    dilations = (1, 2, 3)

    key = jax.random.PRNGKey(0)
    kx, kdw, kpw, kpb, kg, kb, km, kv = jax.random.split(key, 8)

    x = jax.random.normal(kx, (N, C, H, W), jnp.float32)
    # depthwise weights: torch (C,1,3,3) per conv -> ours (3 convs, 3, 3, C)
    dw_w = jax.random.normal(kdw, (3, 3, 3, C), jnp.float32) * 0.1
    # pointwise: torch (Cout, 3C, 1, 1) -> ours (3C, Cout)
    pw_w = jax.random.normal(kpw, (3 * C, Cout), jnp.float32) * 0.1
    pw_b = jax.random.normal(kpb, (Cout,), jnp.float32) * 0.1
    bn_gamma = 1.0 + 0.1 * jax.random.normal(kg, (Cout,), jnp.float32)
    bn_beta = 0.1 * jax.random.normal(kb, (Cout,), jnp.float32)
    bn_mean = 0.1 * jax.random.normal(km, (Cout,), jnp.float32)
    bn_var = jax.random.uniform(kv, (Cout,), jnp.float32, 0.5, 1.5)

    out = rfa_conv_block(x, dw_w, pw_w, pw_b, bn_gamma, bn_beta, bn_mean,
                         bn_var, dilations=dilations)
    out = jax.block_until_ready(out)

    ref = _reference(x, dw_w, pw_w, pw_b, bn_gamma, bn_beta, bn_mean, bn_var,
                     dilations=dilations)
    assert out.shape == (N, Cout, H, W)
    err = float(jnp.max(jnp.abs(out - ref)))
    assert err < 1e-4, err

    print("KERNEL_OK")
</pallas_src>

<mosaic_0001>
module attributes {stable_mosaic.version = 11 : i64} {
  func.func @_rfa_block_kernel(%arg0: i32, %arg1: i32, %arg2: memref<1x16x64xf32, #tpu.memory_space<vmem>>, %arg3: memref<27x64xf32, #tpu.memory_space<vmem>>, %arg4: memref<192x128xf32, #tpu.memory_space<vmem>>, %arg5: memref<1x128xf32, #tpu.memory_space<vmem>>, %arg6: memref<1x8x128xf32, #tpu.memory_space<vmem>>, %arg7: memref<22x88xf32, #tpu.memory_space<vmem>>, %arg8: memref<8x192xf32, #tpu.memory_space<vmem>>) attributes {dimension_semantics = [#tpu.dimension_semantics<parallel>, #tpu.dimension_semantics<arbitrary>], iteration_bounds = array<i64: 2, 2>, scalar_prefetch = 0 : i64, scratch_operands = 2 : i64, tpu.core_type = #tpu.core_type<tc>, window_params = [{transform_indices = @transform_0, window_bounds = array<i64: 1, 16, 64>}, {pipeline_mode = #tpu.pipeline_mode<synchronous>, transform_indices = @transform_1, window_bounds = array<i64: 27, 64>}, {pipeline_mode = #tpu.pipeline_mode<synchronous>, transform_indices = @transform_2, window_bounds = array<i64: 192, 128>}, {pipeline_mode = #tpu.pipeline_mode<synchronous>, transform_indices = @transform_3, window_bounds = array<i64: 1, 128>}, {transform_indices = @transform_4, window_bounds = array<i64: 1, 8, 128>}]} {
    %c0_i32 = arith.constant 0 : i32
    %0 = arith.cmpi eq, %arg1, %c0_i32 : i32
    %1 = arith.extui %0 : i1 to i32
    %c0_i32_0 = arith.constant 0 : i32
    %2 = arith.cmpi ne, %1, %c0_i32_0 : i32
    scf.if %2 {
      %cst_71 = arith.constant 0.000000e+00 : f32
      %185 = vector.broadcast %cst_71 : f32 to vector<3x88xf32>
      %c0_72 = arith.constant 0 : index
      %c0_73 = arith.constant 0 : index
      %186 = vector.load %arg7[%c0_72, %c0_73] : memref<22x88xf32, #tpu.memory_space<vmem>>, vector<3x88xf32>
      tpu.vector_store %arg7[%c0_72, %c0_73], %185 {strides = array<i32>} : memref<22x88xf32, #tpu.memory_space<vmem>>, vector<3x88xf32>,
      %cst_74 = arith.constant 0.000000e+00 : f32
      %187 = vector.broadcast %cst_74 : f32 to vector<3x88xf32>
      %c19_75 = arith.constant 19 : index
      %c0_76 = arith.constant 0 : index
      %188 = vector.load %arg7[%c19_75, %c0_76] : memref<22x88xf32, #tpu.memory_space<vmem>>, vector<3x88xf32>
      tpu.vector_store %arg7[%c19_75, %c0_76], %187 {strides = array<i32>} : memref<22x88xf32, #tpu.memory_space<vmem>>, vector<3x88xf32>,
      %cst_77 = arith.constant 0.000000e+00 : f32
      %189 = vector.broadcast %cst_77 : f32 to vector<16x12xf32>
      %c3_78 = arith.constant 3 : index
      %c0_79 = arith.constant 0 : index
      %190 = vector.load %arg7[%c3_78, %c0_79] : memref<22x88xf32, #tpu.memory_space<vmem>>, vector<16x12xf32>
      tpu.vector_store %arg7[%c3_78, %c0_79], %189 {strides = array<i32>} : memref<22x88xf32, #tpu.memory_space<vmem>>, vector<16x12xf32>,
      %cst_80 = arith.constant 0.000000e+00 : f32
      %191 = vector.broadcast %cst_80 : f32 to vector<16x12xf32>
      %c3_81 = arith.constant 3 : index
      %c76 = arith.constant 76 : index
      %192 = vector.load %arg7[%c3_81, %c76] : memref<22x88xf32, #tpu.memory_space<vmem>>, vector<16x12xf32>
      tpu.vector_store %arg7[%c3_81, %c76], %191 {strides = array<i32>} : memref<22x88xf32, #tpu.memory_space<vmem>>, vector<16x12xf32>,
      %c0_82 = arith.constant 0 : index
      %c0_83 = arith.constant 0 : index
      %c0_84 = arith.constant 0 : index
      %193 = vector.load %arg2[%c0_82, %c0_83, %c0_84] : memref<1x16x64xf32, #tpu.memory_space<vmem>>, vector<1x16x64xf32>
      %194 = vector.shape_cast %193 : vector<1x16x64xf32> to vector<16x64xf32>
      %c3_85 = arith.constant 3 : index
      %c12_86 = arith.constant 12 : index
      %195 = vector.load %arg7[%c3_85, %c12_86] : memref<22x88xf32, #tpu.memory_space<vmem>>, vector<16x64xf32>
      tpu.vector_store %arg7[%c3_85, %c12_86], %194 {strides = array<i32>} : memref<22x88xf32, #tpu.memory_space<vmem>>, vector<16x64xf32>,
    } else {
    }
    %c8_i32 = arith.constant 8 : i32
    %3 = arith.muli %arg1, %c8_i32 : i32
    %4 = tpu.assume_multiple %3, 8 : i32
    %c2_i32 = arith.constant 2 : i32
    %5 = arith.addi %4, %c2_i32 : i32
    %6 = arith.index_cast %5 : i32 to index
    %c8 = arith.constant 8 : index
    %7 = vector.load %arg7[%6, %c8] : memref<22x88xf32, #tpu.memory_space<vmem>>, vector<8x64xf32>
    %c0 = arith.constant 0 : index
    %c0_1 = arith.constant 0 : index
    %8 = vector.load %arg3[%c0, %c0_1] : memref<27x64xf32, #tpu.memory_space<vmem>>, vector<1x64xf32>
    %9 = vector.broadcast %8 : vector<1x64xf32> to vector<8x64xf32>
    %10 = arith.mulf %7, %9 : vector<8x64xf32>
    %11 = arith.index_cast %5 : i32 to index
    %c12 = arith.constant 12 : index
    %12 = vector.load %arg7[%11, %c12] : memref<22x88xf32, #tpu.memory_space<vmem>>, vector<8x64xf32>
    %c1 = arith.constant 1 : index
    %c0_2 = arith.constant 0 : index
    %13 = vector.load %arg3[%c1, %c0_2] : memref<27x64xf32, #tpu.memory_space<vmem>>, vector<1x64xf32>
    %14 = vector.broadcast %13 : vector<1x64xf32> to vector<8x64xf32>
    %15 = arith.mulf %12, %14 : vector<8x64xf32>
    %16 = arith.addf %10, %15 : vector<8x64xf32>
    %17 = arith.index_cast %5 : i32 to index
    %c16 = arith.constant 16 : index
    %18 = vector.load %arg7[%17, %c16] : memref<22x88xf32, #tpu.memory_space<vmem>>, vector<8x64xf32>
    %c2 = arith.constant 2 : index
    %c0_3 = arith.constant 0 : index
    %19 = vector.load %arg3[%c2, %c0_3] : memref<27x64xf32, #tpu.memory_space<vmem>>, vector<1x64xf32>
    %20 = vector.broadcast %19 : vector<1x64xf32> to vector<8x64xf32>
    %21 = arith.mulf %18, %20 : vector<8x64xf32>
    %22 = arith.addf %16, %21 : vector<8x64xf32>
    %c3_i32 = arith.constant 3 : i32
    %23 = arith.addi %4, %c3_i32 : i32
    %24 = arith.index_cast %23 : i32 to index
    %c8_4 = arith.constant 8 : index
    %25 = vector.load %arg7[%24, %c8_4] : memref<22x88xf32, #tpu.memory_space<vmem>>, vector<8x64xf32>
    %c3 = arith.constant 3 : index
    %c0_5 = arith.constant 0 : index
    %26 = vector.load %arg3[%c3, %c0_5] : memref<27x64xf32, #tpu.memory_space<vmem>>, vector<1x64xf32>
    %27 = vector.broadcast %26 : vector<1x64xf32> to vector<8x64xf32>
    %28 = arith.mulf %25, %27 : vector<8x64xf32>
    %29 = arith.addf %22, %28 : vector<8x64xf32>
    %30 = arith.index_cast %23 : i32 to index
    %c12_6 = arith.constant 12 : index
    %31 = vector.load %arg7[%30, %c12_6] : memref<22x88xf32, #tpu.memory_space<vmem>>, vector<8x64xf32>
    %c4 = arith.constant 4 : index
    %c0_7 = arith.constant 0 : index
    %32 = vector.load %arg3[%c4, %c0_7] : memref<27x64xf32, #tpu.memory_space<vmem>>, vector<1x64xf32>
    %33 = vector.broadcast %32 : vector<1x64xf32> to vector<8x64xf32>
    %34 = arith.mulf %31, %33 : vector<8x64xf32>
    %35 = arith.addf %29, %34 : vector<8x64xf32>
    %36 = arith.index_cast %23 : i32 to index
    %c16_8 = arith.constant 16 : index
    %37 = vector.load %arg7[%36, %c16_8] : memref<22x88xf32, #tpu.memory_space<vmem>>, vector<8x64xf32>
    %c5 = arith.constant 5 : index
    %c0_9 = arith.constant 0 : index
    %38 = vector.load %arg3[%c5, %c0_9] : memref<27x64xf32, #tpu.memory_space<vmem>>, vector<1x64xf32>
    %39 = vector.broadcast %38 : vector<1x64xf32> to vector<8x64xf32>
    %40 = arith.mulf %37, %39 : vector<8x64xf32>
    %41 = arith.addf %35, %40 : vector<8x64xf32>
    %c4_i32 = arith.constant 4 : i32
    %42 = arith.addi %4, %c4_i32 : i32
    %43 = arith.index_cast %42 : i32 to index
    %c8_10 = arith.constant 8 : index
    %44 = vector.load %arg7[%43, %c8_10] : memref<22x88xf32, #tpu.memory_space<vmem>>, vector<8x64xf32>
    %c6 = arith.constant 6 : index
    %c0_11 = arith.constant 0 : index
    %45 = vector.load %arg3[%c6, %c0_11] : memref<27x64xf32, #tpu.memory_space<vmem>>, vector<1x64xf32>
    %46 = vector.broadcast %45 : vector<1x64xf32> to vector<8x64xf32>
    %47 = arith.mulf %44, %46 : vector<8x64xf32>
    %48 = arith.addf %41, %47 : vector<8x64xf32>
    %49 = arith.index_cast %42 : i32 to index
    %c12_12 = arith.constant 12 : index
    %50 = vector.load %arg7[%49, %c12_12] : memref<22x88xf32, #tpu.memory_space<vmem>>, vector<8x64xf32>
    %c7 = arith.constant 7 : index
    %c0_13 = arith.constant 0 : index
    %51 = vector.load %arg3[%c7, %c0_13] : memref<27x64xf32, #tpu.memory_space<vmem>>, vector<1x64xf32>
    %52 = vector.broadcast %51 : vector<1x64xf32> to vector<8x64xf32>
    %53 = arith.mulf %50, %52 : vector<8x64xf32>
    %54 = arith.addf %48, %53 : vector<8x64xf32>
    %55 = arith.index_cast %42 : i32 to index
    %c16_14 = arith.constant 16 : index
    %56 = vector.load %arg7[%55, %c16_14] : memref<22x88xf32, #tpu.memory_space<vmem>>, vector<8x64xf32>
    %c8_15 = arith.constant 8 : index
    %c0_16 = arith.constant 0 : index
    %57 = vector.load %arg3[%c8_15, %c0_16] : memref<27x64xf32, #tpu.memory_space<vmem>>, vector<1x64xf32>
    %58 = vector.broadcast %57 : vector<1x64xf32> to vector<8x64xf32>
    %59 = arith.mulf %56, %58 : vector<8x64xf32>
    %60 = arith.addf %54, %59 : vector<8x64xf32>
    %c0_17 = arith.constant 0 : index
    %c0_18 = arith.constant 0 : index
    %61 = vector.load %arg8[%c0_17, %c0_18] : memref<8x192xf32, #tpu.memory_space<vmem>>, vector<8x64xf32>
    tpu.vector_store %arg8[%c0_17, %c0_18], %60 {strides = array<i32>} : memref<8x192xf32, #tpu.memory_space<vmem>>, vector<8x64xf32>,
    %c1_i32 = arith.constant 1 : i32
    %62 = arith.addi %4, %c1_i32 : i32
    %63 = arith.index_cast %62 : i32 to index
    %c4_19 = arith.constant 4 : index
    %64 = vector.load %arg7[%63, %c4_19] : memref<22x88xf32, #tpu.memory_space<vmem>>, vector<8x64xf32>
    %c9 = arith.constant 9 : index
    %c0_20 = arith.constant 0 : index
    %65 = vector.load %arg3[%c9, %c0_20] : memref<27x64xf32, #tpu.memory_space<vmem>>, vector<1x64xf32>
    %66 = vector.broadcast %65 : vector<1x64xf32> to vector<8x64xf32>
    %67 = arith.mulf %64, %66 : vector<8x64xf32>
    %68 = arith.index_cast %62 : i32 to index
    %c12_21 = arith.constant 12 : index
    %69 = vector.load %arg7[%68, %c12_21] : memref<22x88xf32, #tpu.memory_space<vmem>>, vector<8x64xf32>
    %c10 = arith.constant 10 : index
    %c0_22 = arith.constant 0 : index
    %70 = vector.load %arg3[%c10, %c0_22] : memref<27x64xf32, #tpu.memory_space<vmem>>, vector<1x64xf32>
    %71 = vector.broadcast %70 : vector<1x64xf32> to vector<8x64xf32>
    %72 = arith.mulf %69, %71 : vector<8x64xf32>
    %73 = arith.addf %67, %72 : vector<8x64xf32>
    %74 = arith.index_cast %62 : i32 to index
    %c20 = arith.constant 20 : index
    %75 = vector.load %arg7[%74, %c20] : memref<22x88xf32, #tpu.memory_space<vmem>>, vector<8x64xf32>
    %c11 = arith.constant 11 : index
    %c0_23 = arith.constant 0 : index
    %76 = vector.load %arg3[%c11, %c0_23] : memref<27x64xf32, #tpu.memory_space<vmem>>, vector<1x64xf32>
    %77 = vector.broadcast %76 : vector<1x64xf32> to vector<8x64xf32>
    %78 = arith.mulf %75, %77 : vector<8x64xf32>
    %79 = arith.addf %73, %78 : vector<8x64xf32>
    %c3_i32_24 = arith.constant 3 : i32
    %80 = arith.addi %4, %c3_i32_24 : i32
    %81 = arith.index_cast %80 : i32 to index
    %c4_25 = arith.constant 4 : index
    %82 = vector.load %arg7[%81, %c4_25] : memref<22x88xf32, #tpu.memory_space<vmem>>, vector<8x64xf32>
    %c12_26 = arith.constant 12 : index
    %c0_27 = arith.constant 0 : index
    %83 = vector.load %arg3[%c12_26, %c0_27] : memref<27x64xf32, #tpu.memory_space<vmem>>, vector<1x64xf32>
    %84 = vector.broadcast %83 : vector<1x64xf32> to vector<8x64xf32>
    %85 = arith.mulf %82, %84 : vector<8x64xf32>
    %86 = arith.addf %79, %85 : vector<8x64xf32>
    %87 = arith.index_cast %80 : i32 to index
    %c12_28 = arith.constant 12 : index
    %88 = vector.load %arg7[%87, %c12_28] : memref<22x88xf32, #tpu.memory_space<vmem>>, vector<8x64xf32>
    %c13 = arith.constant 13 : index
    %c0_29 = arith.constant 0 : index
    %89 = vector.load %arg3[%c13, %c0_29] : memref<27x64xf32, #tpu.memory_space<vmem>>, vector<1x64xf32>
    %90 = vector.broadcast %89 : vector<1x64xf32> to vector<8x64xf32>
    %91 = arith.mulf %88, %90 : vector<8x64xf32>
    %92 = arith.addf %86, %91 : vector<8x64xf32>
    %93 = arith.index_cast %80 : i32 to index
    %c20_30 = arith.constant 20 : index
    %94 = vector.load %arg7[%93, %c20_30] : memref<22x88xf32, #tpu.memory_space<vmem>>, vector<8x64xf32>
    %c14 = arith.constant 14 : index
    %c0_31 = arith.constant 0 : index
    %95 = vector.load %arg3[%c14, %c0_31] : memref<27x64xf32, #tpu.memory_space<vmem>>, vector<1x64xf32>
    %96 = vector.broadcast %95 : vector<1x64xf32> to vector<8x64xf32>
    %97 = arith.mulf %94, %96 : vector<8x64xf32>
    %98 = arith.addf %92, %97 : vector<8x64xf32>
    %c5_i32 = arith.constant 5 : i32
    %99 = arith.addi %4, %c5_i32 : i32
    %100 = arith.index_cast %99 : i32 to index
    %c4_32 = arith.constant 4 : index
    %101 = vector.load %arg7[%100, %c4_32] : memref<22x88xf32, #tpu.memory_space<vmem>>, vector<8x64xf32>
    %c15 = arith.constant 15 : index
    %c0_33 = arith.constant 0 : index
    %102 = vector.load %arg3[%c15, %c0_33] : memref<27x64xf32, #tpu.memory_space<vmem>>, vector<1x64xf32>
    %103 = vector.broadcast %102 : vector<1x64xf32> to vector<8x64xf32>
    %104 = arith.mulf %101, %103 : vector<8x64xf32>
    %105 = arith.addf %98, %104 : vector<8x64xf32>
    %106 = arith.index_cast %99 : i32 to index
    %c12_34 = arith.constant 12 : index
    %107 = vector.load %arg7[%106, %c12_34] : memref<22x88xf32, #tpu.memory_space<vmem>>, vector<8x64xf32>
    %c16_35 = arith.constant 16 : index
    %c0_36 = arith.constant 0 : index
    %108 = vector.load %arg3[%c16_35, %c0_36] : memref<27x64xf32, #tpu.memory_space<vmem>>, vector<1x64xf32>
    %109 = vector.broadcast %108 : vector<1x64xf32> to vector<8x64xf32>
    %110 = arith.mulf %107, %109 : vector<8x64xf32>
    %111 = arith.addf %105, %110 : vector<8x64xf32>
    %112 = arith.index_cast %99 : i32 to index
    %c20_37 = arith.constant 20 : index
    %113 = vector.load %arg7[%112, %c20_37] : memref<22x88xf32, #tpu.memory_space<vmem>>, vector<8x64xf32>
    %c17 = arith.constant 17 : index
    %c0_38 = arith.constant 0 : index
    %114 = vector.load %arg3[%c17, %c0_38] : memref<27x64xf32, #tpu.memory_space<vmem>>, vector<1x64xf32>
    %115 = vector.broadcast %114 : vector<1x64xf32> to vector<8x64xf32>
    %116 = arith.mulf %113, %115 : vector<8x64xf32>
    %117 = arith.addf %111, %116 : vector<8x64xf32>
    %c0_39 = arith.constant 0 : index
    %c64 = arith.constant 64 : index
    %118 = vector.load %arg8[%c0_39, %c64] : memref<8x192xf32, #tpu.memory_space<vmem>>, vector<8x64xf32>
    tpu.vector_store %arg8[%c0_39, %c64], %117 {strides = array<i32>} : memref<8x192xf32, #tpu.memory_space<vmem>>, vector<8x64xf32>,
    %c0_i32_40 = arith.constant 0 : i32
    %119 = arith.addi %4, %c0_i32_40 : i32
    %120 = arith.index_cast %119 : i32 to index
    %c0_41 = arith.constant 0 : index
    %121 = vector.load %arg7[%120, %c0_41] : memref<22x88xf32, #tpu.memory_space<vmem>>, vector<8x64xf32>
    %c18 = arith.constant 18 : index
    %c0_42 = arith.constant 0 : index
    %122 = vector.load %arg3[%c18, %c0_42] : memref<27x64xf32, #tpu.memory_space<vmem>>, vector<1x64xf32>
    %123 = vector.broadcast %122 : vector<1x64xf32> to vector<8x64xf32>
    %124 = arith.mulf %121, %123 : vector<8x64xf32>
    %125 = arith.index_cast %119 : i32 to index
    %c12_43 = arith.constant 12 : index
    %126 = vector.load %arg7[%125, %c12_43] : memref<22x88xf32, #tpu.memory_space<vmem>>, vector<8x64xf32>
    %c19 = arith.constant 19 : index
    %c0_44 = arith.constant 0 : index
    %127 = vector.load %arg3[%c19, %c0_44] : memref<27x64xf32, #tpu.memory_space<vmem>>, vector<1x64xf32>
    %128 = vector.broadcast %127 : vector<1x64xf32> to vector<8x64xf32>
    %129 = arith.mulf %126, %128 : vector<8x64xf32>
    %130 = arith.addf %124, %129 : vector<8x64xf32>
    %131 = arith.index_cast %119 : i32 to index
    %c24 = arith.constant 24 : index
    %132 = vector.load %arg7[%131, %c24] : memref<22x88xf32, #tpu.memory_space<vmem>>, vector<8x64xf32>
    %c20_45 = arith.constant 20 : index
    %c0_46 = arith.constant 0 : index
    %133 = vector.load %arg3[%c20_45, %c0_46] : memref<27x64xf32, #tpu.memory_space<vmem>>, vector<1x64xf32>
    %134 = vector.broadcast %133 : vector<1x64xf32> to vector<8x64xf32>
    %135 = arith.mulf %132, %134 : vector<8x64xf32>
    %136 = arith.addf %130, %135 : vector<8x64xf32>
    %c3_i32_47 = arith.constant 3 : i32
    %137 = arith.addi %4, %c3_i32_47 : i32
    %138 = arith.index_cast %137 : i32 to index
    %c0_48 = arith.constant 0 : index
    %139 = vector.load %arg7[%138, %c0_48] : memref<22x88xf32, #tpu.memory_space<vmem>>, vector<8x64xf32>
    %c21 = arith.constant 21 : index
    %c0_49 = arith.constant 0 : index
    %140 = vector.load %arg3[%c21, %c0_49] : memref<27x64xf32, #tpu.memory_space<vmem>>, vector<1x64xf32>
    %141 = vector.broadcast %140 : vector<1x64xf32> to vector<8x64xf32>
    %142 = arith.mulf %139, %141 : vector<8x64xf32>
    %143 = arith.addf %136, %142 : vector<8x64xf32>
    %144 = arith.index_cast %137 : i32 to index
    %c12_50 = arith.constant 12 : index
    %145 = vector.load %arg7[%144, %c12_50] : memref<22x88xf32, #tpu.memory_space<vmem>>, vector<8x64xf32>
    %c22 = arith.constant 22 : index
    %c0_51 = arith.constant 0 : index
    %146 = vector.load %arg3[%c22, %c0_51] : memref<27x64xf32, #tpu.memory_space<vmem>>, vector<1x64xf32>
    %147 = vector.broadcast %146 : vector<1x64xf32> to vector<8x64xf32>
    %148 = arith.mulf %145, %147 : vector<8x64xf32>
    %149 = arith.addf %143, %148 : vector<8x64xf32>
    %150 = arith.index_cast %137 : i32 to index
    %c24_52 = arith.constant 24 : index
    %151 = vector.load %arg7[%150, %c24_52] : memref<22x88xf32, #tpu.memory_space<vmem>>, vector<8x64xf32>
    %c23 = arith.constant 23 : index
    %c0_53 = arith.constant 0 : index
    %152 = vector.load %arg3[%c23, %c0_53] : memref<27x64xf32, #tpu.memory_space<vmem>>, vector<1x64xf32>
    %153 = vector.broadcast %152 : vector<1x64xf32> to vector<8x64xf32>
    %154 = arith.mulf %151, %153 : vector<8x64xf32>
    %155 = arith.addf %149, %154 : vector<8x64xf32>
    %c6_i32 = arith.constant 6 : i32
    %156 = arith.addi %4, %c6_i32 : i32
    %157 = arith.index_cast %156 : i32 to index
    %c0_54 = arith.constant 0 : index
    %158 = vector.load %arg7[%157, %c0_54] : memref<22x88xf32, #tpu.memory_space<vmem>>, vector<8x64xf32>
    %c24_55 = arith.constant 24 : index
    %c0_56 = arith.constant 0 : index
    %159 = vector.load %arg3[%c24_55, %c0_56] : memref<27x64xf32, #tpu.memory_space<vmem>>, vector<1x64xf32>
    %160 = vector.broadcast %159 : vector<1x64xf32> to vector<8x64xf32>
    %161 = arith.mulf %158, %160 : vector<8x64xf32>
    %162 = arith.addf %155, %161 : vector<8x64xf32>
    %163 = arith.index_cast %156 : i32 to index
    %c12_57 = arith.constant 12 : index
    %164 = vector.load %arg7[%163, %c12_57] : memref<22x88xf32, #tpu.memory_space<vmem>>, vector<8x64xf32>
    %c25 = arith.constant 25 : index
    %c0_58 = arith.constant 0 : index
    %165 = vector.load %arg3[%c25, %c0_58] : memref<27x64xf32, #tpu.memory_space<vmem>>, vector<1x64xf32>
    %166 = vector.broadcast %165 : vector<1x64xf32> to vector<8x64xf32>
    %167 = arith.mulf %164, %166 : vector<8x64xf32>
    %168 = arith.addf %162, %167 : vector<8x64xf32>
    %169 = arith.index_cast %156 : i32 to index
    %c24_59 = arith.constant 24 : index
    %170 = vector.load %arg7[%169, %c24_59] : memref<22x88xf32, #tpu.memory_space<vmem>>, vector<8x64xf32>
    %c26 = arith.constant 26 : index
    %c0_60 = arith.constant 0 : index
    %171 = vector.load %arg3[%c26, %c0_60] : memref<27x64xf32, #tpu.memory_space<vmem>>, vector<1x64xf32>
    %172 = vector.broadcast %171 : vector<1x64xf32> to vector<8x64xf32>
    %173 = arith.mulf %170, %172 : vector<8x64xf32>
    %174 = arith.addf %168, %173 : vector<8x64xf32>
    %c0_61 = arith.constant 0 : index
    %c128 = arith.constant 128 : index
    %175 = vector.load %arg8[%c0_61, %c128] : memref<8x192xf32, #tpu.memory_space<vmem>>, vector<8x64xf32>
    tpu.vector_store %arg8[%c0_61, %c128], %174 {strides = array<i32>} : memref<8x192xf32, #tpu.memory_space<vmem>>, vector<8x64xf32>,
    %c0_62 = arith.constant 0 : index
    %c0_63 = arith.constant 0 : index
    %176 = vector.load %arg8[%c0_62, %c0_63] : memref<8x192xf32, #tpu.memory_space<vmem>>, vector<8x192xf32>
    %c0_64 = arith.constant 0 : index
    %c0_65 = arith.constant 0 : index
    %177 = vector.load %arg4[%c0_64, %c0_65] : memref<192x128xf32, #tpu.memory_space<vmem>>, vector<192x128xf32>
    %cst = arith.constant dense<0.000000e+00> : vector<8x128xf32>
    %178 = tpu.matmul %176, %177, %cst {dimension_numbers = #tpu.dot_dimension_numbers<[1], [0], [0], [1], [0, 0, 1, 1], [], []>} : vector<8x192xf32>, vector<192x128xf32>, vector<8x128xf32> -> vector<8x128xf32>
    %c0_66 = arith.constant 0 : index
    %c0_67 = arith.constant 0 : index
    %179 = vector.load %arg5[%c0_66, %c0_67] : memref<1x128xf32, #tpu.memory_space<vmem>>, vector<1x128xf32>
    %180 = vector.broadcast %179 : vector<1x128xf32> to vector<8x128xf32>
    %181 = arith.addf %178, %180 : vector<8x128xf32>
    %c0_68 = arith.constant 0 : index
    %c0_69 = arith.constant 0 : index
    %c0_70 = arith.constant 0 : index
    %182 = vector.load %arg6[%c0_68, %c0_69, %c0_70] : memref<1x8x128xf32, #tpu.memory_space<vmem>>, vector<1x8x128xf32>
    %183 = vector.shape_cast %182 : vector<1x8x128xf32> to vector<8x128xf32>
    %184 = vector.shape_cast %181 : vector<8x128xf32> to vector<1x8x128xf32>
    tpu.vector_store %arg6[%c0_68, %c0_69, %c0_70], %184 {strides = array<i32>} : memref<1x8x128xf32, #tpu.memory_space<vmem>>, vector<1x8x128xf32>,
    return
  }
  func.func @transform_0(%arg0: i32, %arg1: i32) -> (i32, i32, i32) {
    %c0_i32 = arith.constant 0 : i32
    %c0_i32_0 = arith.constant 0 : i32
    %c0_i32_1 = arith.constant 0 : i32
    return %arg0, %c0_i32, %c0_i32_0 : i32, i32, i32
  }
  func.func @transform_1(%arg0: i32, %arg1: i32) -> (i32, i32) {
    %c0_i32 = arith.constant 0 : i32
    %c0_i32_0 = arith.constant 0 : i32
    %c0_i32_1 = arith.constant 0 : i32
    return %c0_i32, %c0_i32_0 : i32, i32
  }
  func.func @transform_2(%arg0: i32, %arg1: i32) -> (i32, i32) {
    %c0_i32 = arith.constant 0 : i32
    %c0_i32_0 = arith.constant 0 : i32
    %c0_i32_1 = arith.constant 0 : i32
    return %c0_i32, %c0_i32_0 : i32, i32
  }
  func.func @transform_3(%arg0: i32, %arg1: i32) -> (i32, i32) {
    %c0_i32 = arith.constant 0 : i32
    %c0_i32_0 = arith.constant 0 : i32
    %c0_i32_1 = arith.constant 0 : i32
    return %c0_i32, %c0_i32_0 : i32, i32
  }
  func.func @transform_4(%arg0: i32, %arg1: i32) -> (i32, i32, i32) {
    %c0_i32 = arith.constant 0 : i32
    %c0_i32_0 = arith.constant 0 : i32
    return %arg0, %arg1, %c0_i32 : i32, i32, i32
  }
}

</mosaic_0001>

<llo_original>
// kernel: tpu_custom_call.1
$region0: #{tpu_custom_call.1}
  #allocation0 [shape = 'u32[]', space=smem, size = 0x4, offset = 0x4, fixed_abs, tag = 'smem constant byte address 0x4 - core index']
  #allocation1 [shape = 'u32[72,128]{1,0:T(1,128)}', space=vmem, size = 0x9000, scoped, tag = 'internal scratch']
  #allocation2 [shape = 'f32[22,88]{1,0:T(8,128)}', space=vmem, size = 0x3000, scoped, tag = 'scratch operand']
  #allocation3 [shape = 'f32[8,192]{1,0:T(8,128)}', space=vmem, size = 0x2000, scoped, tag = 'scratch operand']
  %s0 = inlined_call_operand.hbm [shape: f32[2,16,64], index: 0, kind: input, shape index: {}]
  %s1 = inlined_call_operand.hbm [shape: f32[27,64], index: 1, kind: input, shape index: {}]
  %s2 = inlined_call_operand.hbm [shape: f32[192,128], index: 2, kind: input, shape index: {}]
  %s3 = inlined_call_operand.vmem [shape: f32[1,128], index: 3, kind: input, shape index: {}]
  %s4 = inlined_call_operand.hbm [shape: f32[2,16,128], index: 4, kind: output, shape index: {}]
  %s5 = sld [smem:[#allocation0]]
  $region65: #{tpu_custom_call.1} parent=0
    _
  %s7 = ssub.s32 1, %s5
  %s8 = scalar_select 0, %s7, %s5
  $region1: #{tpu_custom_call.1} parent=0
    #allocation4 [shape = 'u8[16384]{0}', space=vmem, size = 0x4000, scoped, tag = 'input window, operand 0']
    #allocation5 [shape = 's32[2]{0}', space=sflag, size = 0x8, scoped, tag = 'scoped memory for tpu_custom_call.1']
    #allocation6 [shape = 's32[2]{0}', space=sflag, size = 0x8, scoped, tag = 'scoped memory for tpu_custom_call.1']
    #allocation7 [shape = 'u8[16384]{0}', space=vmem, size = 0x4000, scoped, tag = 'input window, operand 1, single buffered']
    #allocation8 [shape = 's32[1]{0}', space=sflag, size = 0x4, scoped, tag = 'scoped memory for tpu_custom_call.1']
    #allocation9 [shape = 'u8[98304]{0}', space=vmem, size = 0x18000, scoped, tag = 'input window, operand 2, single buffered']
    #allocation10 [shape = 'u8[8192]{0}', space=vmem, size = 0x2000, scoped, tag = 'output window, operand 0']
    %9 = vsyncpa [#allocation5], 0
    %s10 = scalar_lea.sflag [#allocation5], 1
    %11 = vsyncpa %s10, 0
    %12 = vsyncpa [#allocation8], 0
    %13 = vsyncpa [#allocation6], 0
    %s14 = scalar_lea.sflag [#allocation6], 1
    %15 = vsyncpa %s14, 0
    loop: start=0, step=1, limit=6
    $region2: #{tpu_custom_call.1} parent=1 // loop_pre_header
      _
    $region3: #{tpu_custom_call.1} parent=1 // loop_header
      %s17 = sphi 0, %s21
      %p18 = scmp.ge.s32.totalorder %s17, 6
      %s24 = sphi 0, %s36
      %s25 = sphi 0, %s32
      %s26 = sphi 0, %s24
      %s27 = sphi 0, %s25
      %s28 = sphi 0, %s26
      %s29 = sphi 0, %s27
      %s39 = sphi 0, %s41
      %s42 = sphi 0, %s39
      %s43 = sphi 0, %s42
      %s59 = sphi 0, %s43
      %s63 = sphi 0, %s63
      %s65 = sphi 0, %s63
      %s66 = sphi 0, %s65
      %s80 = sphi 0, %s66
      %s84 = sphi 0, %s84
      %s86 = sphi 0, %s84
      %s87 = sphi 0, %s86
      %s101 = sphi 0, %s87
      %s105 = sphi 0, %s105
      %s107 = sphi 0, %s105
      %s108 = sphi 0, %s107
      %s122 = sphi 0, %s108
      %s130 = sphi 0, %s132
      %s133 = sphi 0, %s130
      %s134 = sphi 0, %s133
      %s150 = sphi 0, %s134
    $region4: #{tpu_custom_call.1} parent=1 // loop_header_branch
      %20 = sbr.rel (%p18) target = $region8
    $region5: #{tpu_custom_call.1} parent=1 // loop_body
      %s22 = ssub.s32 %s17, 1
      %s23 = ssub.s32 %s17, 2
      %s30 = sadd.s32 1, %s25
      %p31 = scmp.ge.s32.totalorder %s30, 2
      %s32 = scalar_select %p31, 0, %s30
      %s33 = sadd.s32 1, %s24
      %s34 = scalar_select %p31, %s33, %s24
      %p35 = scmp.ge.s32.totalorder %s34, 2
      %s36 = scalar_select %p35, 0, %s34
      %s37 = ssub.s32 %s24, %s36
      %p38 = scmp.eq.s32.totalorder %s37, 0
      %s40 = sadd.s32 %s39, 1
      %s41 = scalar_select %p38, %s39, %s40
      %p44 = pneg %p38
      %p45 = scmp.eq.s32.totalorder %s17, 3
      %p46 = por %p44, %p45
      %p47 = scmp.ne.s32.totalorder %s39, %s42
      %p48 = scmp.eq.s32.totalorder %s17, 0
      %p49 = por %p47, %p48
      %p50 = scmp.ne.s32.totalorder %s39, %s42
      %p51 = scmp.eq.s32.totalorder %s22, 3
      %p52 = por %p50, %p51
      %p53 = scmp.ne.s32.totalorder %s42, %s43
      %p54 = scmp.eq.s32.totalorder %s22, 0
      %p55 = por %p53, %p54
      %p56 = scmp.ne.s32.totalorder %s42, %s43
      %p57 = scmp.eq.s32.totalorder %s23, 3
      %p58 = por %p56, %p57
      %p60 = scmp.ne.s32.totalorder %s43, %s59
      %p61 = scmp.eq.s32.totalorder %s23, 0
      %p62 = por %p60, %p61
      %s64 = sadd.s32 %s63, 1
      %p67 = scmp.eq.s32.totalorder %s17, 3
      %p68 = scmp.ne.s32.totalorder %s63, %s65
      %p69 = scmp.eq.s32.totalorder %s17, 0
      %p70 = por %p68, %p69
      %p71 = scmp.ne.s32.totalorder %s63, %s65
      %p72 = scmp.eq.s32.totalorder %s22, 3
      %p73 = por %p71, %p72
      %p74 = scmp.ne.s32.totalorder %s65, %s66
      %p75 = scmp.eq.s32.totalorder %s22, 0
      %p76 = por %p74, %p75
      %p77 = scmp.ne.s32.totalorder %s65, %s66
      %p78 = scmp.eq.s32.totalorder %s23, 3
      %p79 = por %p77, %p78
      %p81 = scmp.ne.s32.totalorder %s66, %s80
      %p82 = scmp.eq.s32.totalorder %s23, 0
      %p83 = por %p81, %p82
      %s85 = sadd.s32 %s84, 1
      %p88 = scmp.eq.s32.totalorder %s17, 3
      %p89 = scmp.ne.s32.totalorder %s84, %s86
      %p90 = scmp.eq.s32.totalorder %s17, 0
      %p91 = por %p89, %p90
      %p92 = scmp.ne.s32.totalorder %s84, %s86
      %p93 = scmp.eq.s32.totalorder %s22, 3
      %p94 = por %p92, %p93
      %p95 = scmp.ne.s32.totalorder %s86, %s87
      %p96 = scmp.eq.s32.totalorder %s22, 0
      %p97 = por %p95, %p96
      %p98 = scmp.ne.s32.totalorder %s86, %s87
      %p99 = scmp.eq.s32.totalorder %s23, 3
      %p100 = por %p98, %p99
      %p102 = scmp.ne.s32.totalorder %s87, %s101
      %p103 = scmp.eq.s32.totalorder %s23, 0
      %p104 = por %p102, %p103
      %s106 = sadd.s32 %s105, 1
      %p109 = scmp.eq.s32.totalorder %s17, 3
      %p110 = scmp.ne.s32.totalorder %s105, %s107
      %p111 = scmp.eq.s32.totalorder %s17, 0
      %p112 = por %p110, %p111
      %p113 = scmp.ne.s32.totalorder %s105, %s107
      %p114 = scmp.eq.s32.totalorder %s22, 3
      %p115 = por %p113, %p114
      %p116 = scmp.ne.s32.totalorder %s107, %s108
      %p117 = scmp.eq.s32.totalorder %s22, 0
      %p118 = por %p116, %p117
      %p119 = scmp.ne.s32.totalorder %s107, %s108
      %p120 = scmp.eq.s32.totalorder %s23, 3
      %p121 = por %p119, %p120
      %p123 = scmp.ne.s32.totalorder %s108, %s122
      %p124 = scmp.eq.s32.totalorder %s23, 0
      %p125 = por %p123, %p124
      %s126 = ssub.s32 %s24, %s36
      %s127 = ssub.s32 %s25, %s32
      %s128 = sor.u32 %s126, %s127
      %p129 = scmp.eq.s32.totalorder %s128, 0
      %s131 = sadd.s32 %s130, 1
      %s132 = scalar_select %p129, %s130, %s131
      %p135 = pneg %p129
      %p136 = scmp.eq.s32.totalorder %s17, 3
      %p137 = por %p135, %p136
      %p138 = scmp.ne.s32.totalorder %s130, %s133
      %p139 = scmp.eq.s32.totalorder %s17, 0
      %p140 = por %p138, %p139
      %p141 = scmp.ne.s32.totalorder %s130, %s133
      %p142 = scmp.eq.s32.totalorder %s22, 3
      %p143 = por %p141, %p142
      %p144 = scmp.ne.s32.totalorder %s133, %s134
      %p145 = scmp.eq.s32.totalorder %s22, 0
      %p146 = por %p144, %p145
      %p147 = scmp.ne.s32.totalorder %s133, %s134
      %p148 = scmp.eq.s32.totalorder %s23, 3
      %p149 = por %p147, %p148
      %p151 = scmp.ne.s32.totalorder %s134, %s150
      %p152 = scmp.eq.s32.totalorder %s23, 0
      %p153 = por %p151, %p152
      %p154 = scmp.le.s32.totalorder 1, %s17
      %p155 = scmp.lt.s32.totalorder %s17, 5
      %p156 = pnand %p154, %p155
      %p157 = pneg %p156
      // Predicated region
      $region9: #{tpu_custom_call.1} parent=5 // pred_check
        _
      $region10: #{tpu_custom_call.1} parent=5 // pred_check_branch
        %159 = sbr.rel (%p156) target = $region12
      $region11: #{tpu_custom_call.1} parent=5 // pred_region
        %s160 = ssub.s32 %s17, 1
        // Predicated region
        $region13: #{tpu_custom_call.1} parent=11 // pred_check
          %p161 = pneg %p76
        $region14: #{tpu_custom_call.1} parent=11 // pred_check_branch
          %163 = sbr.rel (%p161) target = $region16
        $region15: #{tpu_custom_call.1} parent=11 // pred_region
          %165 = vsyncadd [#allocation8], 0
          %s166 = sshll.u32 %s1, 4
          %s167 = int_to_ptr.hbm [resolvable:$true] %s166
          %s168 = sshll.u32 [#allocation7], 4
          %s169 = int_to_ptr.vmem [resolvable:$true] %s168
          %174 = dma.hbm_to_vmem [thread:$0]  %s167, 512, %s169, [#allocation8], 128, 128, 8
        $region16: #{tpu_custom_call.1} parent=11 // pred_fallthru
          _
        // Predicated region
        $region17: #{tpu_custom_call.1} parent=11 // pred_check
          %p175 = pneg %p97
        $region18: #{tpu_custom_call.1} parent=11 // pred_check_branch
          %177 = sbr.rel (%p175) target = $region20
        $region19: #{tpu_custom_call.1} parent=11 // pred_region
          %179 = vsyncadd [#allocation8], 0
          %s180 = sshll.u32 %s2, 4
          %s181 = int_to_ptr.hbm [resolvable:$true] %s180
          %s182 = sshll.u32 [#allocation9], 4
          %s183 = int_to_ptr.vmem [resolvable:$true] %s182
          %188 = dma.hbm_to_vmem [thread:$0]  %s181, 3072, %s183, [#allocation8], 128, 128, 8
        $region20: #{tpu_custom_call.1} parent=11 // pred_fallthru
          _
        // Predicated region
        $region21: #{tpu_custom_call.1} parent=11 // pred_check
          %p189 = pneg %p118
        $region22: #{tpu_custom_call.1} parent=11 // pred_check_branch
          %191 = sbr.rel (%p189) target = $region24
        $region23: #{tpu_custom_call.1} parent=11 // pred_region
          _
        $region24: #{tpu_custom_call.1} parent=11 // pred_fallthru
          _
      $region12: #{tpu_custom_call.1} parent=5 // pred_fallthru
        _
      %p192 = scmp.lt.s32.totalorder %s17, 4
      // Predicated region
      $region25: #{tpu_custom_call.1} parent=5 // pred_check
        %p193 = pneg %p192
      $region26: #{tpu_custom_call.1} parent=5 // pred_check_branch
        %195 = sbr.rel (%p193) target = $region28
      $region27: #{tpu_custom_call.1} parent=5 // pred_region
        // Predicated region
        $region29: #{tpu_custom_call.1} parent=27 // pred_check
          %p196 = pneg %p49
        $region30: #{tpu_custom_call.1} parent=27 // pred_check_branch
          %198 = sbr.rel (%p196) target = $region32
        $region31: #{tpu_custom_call.1} parent=27 // pred_region
          %s199 = sand.u32 %s39, 1
          %s200 = scalar_lea.sflag [#allocation5], %s199
          %s201 = sand.u32 %s39, 1
          %s202 = smul.addr %s201, 16
          %s203 = scalar_lea.vmem [#allocation4], %s202
          %205 = vsyncadd %s200, 0
          %s206 = smul.addr %s24, 2
          %s207 = smul.addr %s206, 8
          %s208 = scalar_lea.hbm %s0, %s207
          %s209 = sshll.u32 %s208, 4
          %s210 = int_to_ptr.hbm [resolvable:$true] %s209
          %s211 = sshll.u32 %s203, 4
          %s212 = int_to_ptr.vmem [resolvable:$true] %s211
          %217 = dma.hbm_to_vmem [thread:$0]  %s210, 256, %s212, %s200, 128, 128, 8
        $region32: #{tpu_custom_call.1} parent=27 // pred_fallthru
          _
      $region28: #{tpu_custom_call.1} parent=5 // pred_fallthru
        _
      %p218 = scmp.le.s32.totalorder 1, %s17
      %p219 = scmp.lt.s32.totalorder %s17, 5
      %p220 = pnand %p218, %p219
      %p221 = pneg %p220
      // Predicated region
      $region33: #{tpu_custom_call.1} parent=5 // pred_check
        _
      $region34: #{tpu_custom_call.1} parent=5 // pred_check_branch
        %223 = sbr.rel (%p220) target = $region36
      $region35: #{tpu_custom_call.1} parent=5 // pred_region
        %s224 = ssub.s32 %s17, 1
        %s225 = sand.u32 %s42, 1
        %s226 = scalar_lea.sflag [#allocation5], %s225
        %s227 = sand.u32 %s42, 1
        %s228 = smul.addr %s227, 16
        %s229 = scalar_lea.vmem [#allocation4], %s228
        // Predicated region
        $region37: #{tpu_custom_call.1} parent=35 // pred_check
          %p230 = pneg %p55
        $region38: #{tpu_custom_call.1} parent=35 // pred_check_branch
          %232 = sbr.rel (%p230) target = $region40
        $region39: #{tpu_custom_call.1} parent=35 // pred_region
          %234 = dma.done %s226, 256
        $region40: #{tpu_custom_call.1} parent=35 // pred_fallthru
          _
        // Predicated region
        $region41: #{tpu_custom_call.1} parent=35 // pred_check
          %p235 = pneg %p76
        $region42: #{tpu_custom_call.1} parent=35 // pred_check_branch
          %237 = sbr.rel (%p235) target = $region44
        $region43: #{tpu_custom_call.1} parent=35 // pred_region
          %239 = dma.done [#allocation8], 512
        $region44: #{tpu_custom_call.1} parent=35 // pred_fallthru
          _
        // Predicated region
        $region45: #{tpu_custom_call.1} parent=35 // pred_check
          %p240 = pneg %p97
        $region46: #{tpu_custom_call.1} parent=35 // pred_check_branch
          %242 = sbr.rel (%p240) target = $region48
        $region47: #{tpu_custom_call.1} parent=35 // pred_region
          %244 = dma.done [#allocation8], 3072
        $region48: #{tpu_custom_call.1} parent=35 // pred_fallthru
          _
        %s245 = sand.u32 %s42, 1
        %s246 = scalar_lea.sflag [#allocation5], %s245
        %s247 = sand.u32 %s42, 1
        %s248 = smul.addr %s247, 16
        %s249 = scalar_lea.vmem [#allocation4], %s248
        %p250 = pneg %p55
        %p251 = pneg %p52
        %p252 = pneg %p76
        %p253 = pneg %p73
        %p254 = pneg %p97
        %p255 = pneg %p94
        %p256 = pneg %p118
        %p257 = pneg %p115
        %p258 = pneg %p146
        %p259 = pneg %p143
        %s260 = sand.u32 %s133, 1
        %s261 = scalar_lea.sflag [#allocation6], %s260
        %s262 = sand.u32 %s133, 1
        %s263 = smul.addr %s262, 8
        %s264 = scalar_lea.vmem [#allocation10], %s263
        %p265 = scmp.eq.s32.totalorder %s27, 0
        // Predicated region
        $region49: #{tpu_custom_call.1} parent=35 // pred_check
          %p266 = pneg %p265
        $region50: #{tpu_custom_call.1} parent=35 // pred_check_branch
          %268 = sbr.rel (%p266) target = $region52
        $region51: #{tpu_custom_call.1} parent=35 // pred_region
          %vm269 = vcmask 714752
          %270 = vst.msk [vmem:[#allocation2] sm:$0x7] %vm269, 0.0
          %271 = vst.msk [vmem:[#allocation2 + $0x13] sm:$0x7] %vm269, 0.0
          %vm272 = vcmask 97280
          %273 = vst.msk [vmem:[#allocation2 + $0x3] sm:$0xff] %vm272, 0.0
          %274 = vst.msk [vmem:[#allocation2 + $0xb] sm:$0xff] %vm272, 0.0
          %vm275 = vcmask 720480
          %276 = vst.msk [vmem:[#allocation2 + $0x3] sm:$0xff] %vm275, 0.0
          %277 = vst.msk [vmem:[#allocation2 + $0xb] sm:$0xff] %vm275, 0.0
          %v278 = vld [vmem:[%s229] sm:$0xff]
          %v279 = vld [vmem:[%s229 + $0x8] sm:$0xff]
          %282 = vrot.lane.b32.xlu0 %v278, 12
          %v283 = vpop.permute.xlu0 %282
          %284 = vrot.lane.b32.xlu0 %v279, 12
          %v285 = vpop.permute.xlu0 %284
          %vm288 = vcmask 621664
          %289 = vst.msk [vmem:[#allocation2 + $0x3] sm:$0xff] %vm288, %v283
          %290 = vst.msk [vmem:[#allocation2 + $0xb] sm:$0xff] %vm288, %v285
        $region52: #{tpu_custom_call.1} parent=35 // pred_fallthru
          _
        %s291 = smul.u32 %s27, 8
        %s292 = sadd.s32 %s291, 2
        %s293 = scalar_lea.vmem [#allocation2], %s292
        %v294 = vld [vmem:[%s293] sm:$0xff]
        %v295 = vld [vmem:[#allocation7] sm:$0x1]
        %v296 = vperm.slane %v295, 0
        %298 = vrot.lane.b32.xlu0 %v296, 8
        %v299 = vpop.permute.xlu0 %298
        %v301 = vmul.f32 %v294, %v299
        %v302 = vld [vmem:[#allocation7 + $0x1] sm:$0x1]
        %v303 = vperm.slane %v302, 0
        %305 = vrot.lane.b32.xlu0 %v303, 12
        %v306 = vpop.permute.xlu0 %305
        %v308 = vmul.f32 %v294, %v306
        %310 = vrot.lane.b32.xlu0 %v308, 124
        %v311 = vpop.permute.xlu0 %310
        %v313 = vadd.f32 %v301, %v311
        %v314 = vld [vmem:[#allocation7 + $0x2] sm:$0x1]
        %v315 = vperm.slane %v314, 0
        %317 = vrot.lane.b32.xlu0 %v315, 16
        %v318 = vpop.permute.xlu0 %317
        %v320 = vmul.f32 %v294, %v318
        %322 = vrot.lane.b32.xlu0 %v320, 120
        %v323 = vpop.permute.xlu0 %322
        %v325 = vadd.f32 %v313, %v323
        %s326 = sadd.s32 %s291, 3
        %s327 = scalar_lea.vmem [#allocation2], %s326
        %v328 = vld [vmem:[%s327] sm:$0xff]
        %v329 = vld [vmem:[#allocation7 + $0x3] sm:$0x1]
        %v330 = vperm.slane %v329, 0
        %332 = vrot.lane.b32.xlu0 %v330, 8
        %v333 = vpop.permute.xlu0 %332
        %v335 = vmul.f32 %v328, %v333
        %v336 = vadd.f32 %v325, %v335
        %v337 = vld [vmem:[#allocation7 + $0x4] sm:$0x1]
        %v338 = vperm.slane %v337, 0
        %340 = vrot.lane.b32.xlu0 %v338, 12
        %v341 = vpop.permute.xlu0 %340
        %v343 = vmul.f32 %v328, %v341
        %345 = vrot.lane.b32.xlu0 %v343, 124
        %v346 = vpop.permute.xlu0 %345
        %v348 = vadd.f32 %v336, %v346
        %v349 = vld [vmem:[#allocation7 + $0x5] sm:$0x1]
        %v350 = vperm.slane %v349, 0
        %352 = vrot.lane.b32.xlu0 %v350, 16
        %v353 = vpop.permute.xlu0 %352
        %v355 = vmul.f32 %v328, %v353
        %357 = vrot.lane.b32.xlu0 %v355, 120
        %v358 = vpop.permute.xlu0 %357
        %v360 = vadd.f32 %v348, %v358
        %s361 = sadd.s32 %s291, 4
        %s362 = scalar_lea.vmem [#allocation2], %s361
        %v363 = vld [vmem:[%s362] sm:$0xff]
        %v364 = vld [vmem:[#allocation7 + $0x6] sm:$0x1]
        %v365 = vperm.slane %v364, 0
        %367 = vrot.lane.b32.xlu0 %v365, 8
        %v368 = vpop.permute.xlu0 %367
        %v370 = vmul.f32 %v363, %v368
        %v371 = vadd.f32 %v360, %v370
        %v372 = vld [vmem:[#allocation7 + $0x7] sm:$0x1]
        %v373 = vperm.slane %v372, 0
        %375 = vrot.lane.b32.xlu0 %v373, 12
        %v376 = vpop.permute.xlu0 %375
        %v378 = vmul.f32 %v363, %v376
        %380 = vrot.lane.b32.xlu0 %v378, 124
        %v381 = vpop.permute.xlu0 %380
        %v383 = vadd.f32 %v371, %v381
        %v384 = vld [vmem:[#allocation7 + $0x8] sm:$0x1]
        %v385 = vperm.slane %v384, 0
        %387 = vrot.lane.b32.xlu0 %v385, 16
        %v388 = vpop.permute.xlu0 %387
        %v390 = vmul.f32 %v363, %v388
        %392 = vrot.lane.b32.xlu0 %v390, 120
        %v393 = vpop.permute.xlu0 %392
        %v395 = vadd.f32 %v383, %v393
        %397 = vrot.lane.b32.xlu0 %v395, 120
        %v398 = vpop.permute.xlu0 %397
        %vm400 = vcmask 523264
        %401 = vst.msk [vmem:[#allocation3] sm:$0xff] %vm400, %v398
        %s402 = sadd.s32 %s291, 1
        %s403 = scalar_lea.vmem [#allocation2], %s402
        %v404 = vld [vmem:[%s403] sm:$0xff]
        %v405 = vld [vmem:[#allocation7 + $0x9] sm:$0x1]
        %v406 = vperm.slane %v405, 0
        %408 = vrot.lane.b32.xlu0 %v406, 4
        %v409 = vpop.permute.xlu0 %408
        %v411 = vmul.f32 %v404, %v409
        %v412 = vld [vmem:[#allocation7 + $0xa] sm:$0x1]
        %v413 = vperm.slane %v412, 0
        %415 = vrot.lane.b32.xlu0 %v413, 12
        %v416 = vpop.permute.xlu0 %415
        %v418 = vmul.f32 %v404, %v416
        %420 = vrot.lane.b32.xlu0 %v418, 120
        %v421 = vpop.permute.xlu0 %420
        %v423 = vadd.f32 %v411, %v421
        %v424 = vld [vmem:[#allocation7 + $0xb] sm:$0x1]
        %v425 = vperm.slane %v424, 0
        %427 = vrot.lane.b32.xlu0 %v425, 20
        %v428 = vpop.permute.xlu0 %427
        %v430 = vmul.f32 %v404, %v428
        %432 = vrot.lane.b32.xlu0 %v430, 112
        %v433 = vpop.permute.xlu0 %432
        %v435 = vadd.f32 %v423, %v433
        %v436 = vld [vmem:[%s327] sm:$0xff]
        %v437 = vld [vmem:[#allocation7 + $0xc] sm:$0x1]
        %v438 = vperm.slane %v437, 0
        %440 = vrot.lane.b32.xlu0 %v438, 4
        %v441 = vpop.permute.xlu0 %440
        %v443 = vmul.f32 %v436, %v441
        %v444 = vadd.f32 %v435, %v443
        %v445 = vld [vmem:[#allocation7 + $0xd] sm:$0x1]
        %v446 = vperm.slane %v445, 0
        %448 = vrot.lane.b32.xlu0 %v446, 12
        %v449 = vpop.permute.xlu0 %448
        %v451 = vmul.f32 %v436, %v449
        %453 = vrot.lane.b32.xlu0 %v451, 120
        %v454 = vpop.permute.xlu0 %453
        %v456 = vadd.f32 %v444, %v454
        %v457 = vld [vmem:[#allocation7 + $0xe] sm:$0x1]
        %v458 = vperm.slane %v457, 0
        %460 = vrot.lane.b32.xlu0 %v458, 20
        %v461 = vpop.permute.xlu0 %460
        %v463 = vmul.f32 %v436, %v461
        %465 = vrot.lane.b32.xlu0 %v463, 112
        %v466 = vpop.permute.xlu0 %465
        %v468 = vadd.f32 %v456, %v466
        %s469 = sadd.s32 %s291, 5
        %s470 = scalar_lea.vmem [#allocation2], %s469
        %v471 = vld [vmem:[%s470] sm:$0xff]
        %v472 = vld [vmem:[#allocation7 + $0xf] sm:$0x1]
        %v473 = vperm.slane %v472, 0
        %475 = vrot.lane.b32.xlu0 %v473, 4
        %v476 = vpop.permute.xlu0 %475
        %v478 = vmul.f32 %v471, %v476
        %v479 = vadd.f32 %v468, %v478
        %v480 = vld [vmem:[#allocation7 + $0x10] sm:$0x1]
        %v481 = vperm.slane %v480, 0
        %483 = vrot.lane.b32.xlu0 %v481, 12
        %v484 = vpop.permute.xlu0 %483
        %v486 = vmul.f32 %v471, %v484
        %488 = vrot.lane.b32.xlu0 %v486, 120
        %v489 = vpop.permute.xlu0 %488
        %v491 = vadd.f32 %v479, %v489
        %v492 = vld [vmem:[#allocation7 + $0x11] sm:$0x1]
        %v493 = vperm.slane %v492, 0
        %495 = vrot.lane.b32.xlu0 %v493, 20
        %v496 = vpop.permute.xlu0 %495
        %v498 = vmul.f32 %v471, %v496
        %500 = vrot.lane.b32.xlu0 %v498, 112
        %v501 = vpop.permute.xlu0 %500
        %v503 = vadd.f32 %v491, %v501
        %505 = vrot.lane.b32.xlu0 %v503, 60
        %v506 = vpop.permute.xlu0 %505
        %vm508 = vcmask 1048064
        %509 = vst.msk [vmem:[#allocation3] sm:$0xff] %vm508, %v506
        %s510 = scalar_lea.vmem [#allocation2], %s291
        %v511 = vld [vmem:[%s510] sm:$0xff]
        %v512 = vld [vmem:[#allocation7 + $0x12] sm:$0x1]
        %v513 = vperm.slane %v512, 0
        %v514 = vmul.f32 %v511, %v513
        %v515 = vld [vmem:[#allocation7 + $0x13] sm:$0x1]
        %v516 = vperm.slane %v515, 0
        %518 = vrot.lane.b32.xlu0 %v516, 12
        %v519 = vpop.permute.xlu0 %518
        %v521 = vmul.f32 %v511, %v519
        %523 = vrot.lane.b32.xlu0 %v521, 116
        %v524 = vpop.permute.xlu0 %523
        %v526 = vadd.f32 %v514, %v524
        %v527 = vld [vmem:[#allocation7 + $0x14] sm:$0x1]
        %v528 = vperm.slane %v527, 0
        %530 = vrot.lane.b32.xlu0 %v528, 24
        %v531 = vpop.permute.xlu0 %530
        %v533 = vmul.f32 %v511, %v531
        %535 = vrot.lane.b32.xlu0 %v533, 104
        %v536 = vpop.permute.xlu0 %535
        %v538 = vadd.f32 %v526, %v536
        %v539 = vld [vmem:[%s327] sm:$0xff]
        %v540 = vld [vmem:[#allocation7 + $0x15] sm:$0x1]
        %v541 = vperm.slane %v540, 0
        %v542 = vmul.f32 %v539, %v541
        %v543 = vadd.f32 %v538, %v542
        %v544 = vld [vmem:[#allocation7 + $0x16] sm:$0x1]
        %v545 = vperm.slane %v544, 0
        %547 = vrot.lane.b32.xlu0 %v545, 12
        %v548 = vpop.permute.xlu0 %547
        %v550 = vmul.f32 %v539, %v548
        %552 = vrot.lane.b32.xlu0 %v550, 116
        %v553 = vpop.permute.xlu0 %552
        %v555 = vadd.f32 %v543, %v553
        %v556 = vld [vmem:[#allocation7 + $0x17] sm:$0x1]
        %v557 = vperm.slane %v556, 0
        %559 = vrot.lane.b32.xlu0 %v557, 24
        %v560 = vpop.permute.xlu0 %559
        %v562 = vmul.f32 %v539, %v560
        %564 = vrot.lane.b32.xlu0 %v562, 104
        %v565 = vpop.permute.xlu0 %564
        %v567 = vadd.f32 %v555, %v565
        %s568 = sadd.s32 %s291, 6
        %s569 = scalar_lea.vmem [#allocation2], %s568
        %v570 = vld [vmem:[%s569] sm:$0xff]
        %v571 = vld [vmem:[#allocation7 + $0x18] sm:$0x1]
        %v572 = vperm.slane %v571, 0
        %v573 = vmul.f32 %v570, %v572
        %v574 = vadd.f32 %v567, %v573
        %v575 = vld [vmem:[#allocation7 + $0x19] sm:$0x1]
        %v576 = vperm.slane %v575, 0
        %578 = vrot.lane.b32.xlu0 %v576, 12
        %v579 = vpop.permute.xlu0 %578
        %v581 = vmul.f32 %v570, %v579
        %583 = vrot.lane.b32.xlu0 %v581, 116
        %v584 = vpop.permute.xlu0 %583
        %v586 = vadd.f32 %v574, %v584
        %v587 = vld [vmem:[#allocation7 + $0x1a] sm:$0x1]
        %v588 = vperm.slane %v587, 0
        %590 = vrot.lane.b32.xlu0 %v588, 24
        %v591 = vpop.permute.xlu0 %590
        %v593 = vmul.f32 %v570, %v591
        %595 = vrot.lane.b32.xlu0 %v593, 104
        %v596 = vpop.permute.xlu0 %595
        %v598 = vadd.f32 %v586, %v596
        %599 = vst.msk [vmem:[#allocation3 + $0x8] sm:$0xff] %vm400, %v598
        %v600 = vld [vmem:[#allocation3] sm:$0xff]
        %v601 = vld [vmem:[#allocation3 + $0x8] sm:$0xff]
        %v602 = vld [vmem:[#allocation9] sm:$0xff]
        %v603 = vld [vmem:[#allocation9 + $0x8] sm:$0xff]
        %v604 = vld [vmem:[#allocation9 + $0x10] sm:$0xff]
        %v605 = vld [vmem:[#allocation9 + $0x18] sm:$0xff]
        %v606 = vld [vmem:[#allocation9 + $0x20] sm:$0xff]
        %v607 = vld [vmem:[#allocation9 + $0x28] sm:$0xff]
        %v608 = vld [vmem:[#allocation9 + $0x30] sm:$0xff]
        %v609 = vld [vmem:[#allocation9 + $0x38] sm:$0xff]
        %v610 = vld [vmem:[#allocation9 + $0x40] sm:$0xff]
        %v611 = vld [vmem:[#allocation9 + $0x48] sm:$0xff]
        %v612 = vld [vmem:[#allocation9 + $0x50] sm:$0xff]
        %v613 = vld [vmem:[#allocation9 + $0x58] sm:$0xff]
        %v614 = vld [vmem:[#allocation9 + $0x60] sm:$0xff]
        %v615 = vld [vmem:[#allocation9 + $0x68] sm:$0xff]
        %v616 = vld [vmem:[#allocation9 + $0x70] sm:$0xff]
        %v617 = vld [vmem:[#allocation9 + $0x78] sm:$0xff]
        %v618 = vld [vmem:[#allocation9 + $0x80] sm:$0xff]
        %v619 = vld [vmem:[#allocation9 + $0x88] sm:$0xff]
        %v620 = vld [vmem:[#allocation9 + $0x90] sm:$0xff]
        %v621 = vld [vmem:[#allocation9 + $0x98] sm:$0xff]
        %v622 = vld [vmem:[#allocation9 + $0xa0] sm:$0xff]
        %v623 = vld [vmem:[#allocation9 + $0xa8] sm:$0xff]
        %v624 = vld [vmem:[#allocation9 + $0xb0] sm:$0xff]
        %v625 = vld [vmem:[#allocation9 + $0xb8] sm:$0xff]
        %v626 = vld [vmem:[%s3] sm:$0x1]
        %v628 = vperm.slane %v626, 0
        %v631 = vsel %vm400, %v601, 0
        %633 = vmatpush.msra.mxu0 %v617
        %634 = vmatpush.msra.mxu0 %v616
        %635 = vmatpush.msra.mxu0 %v615
        %636 = vmatpush.msra.mxu0 %v614
        %637 = vmatpush.msra.mxu0 %v613
        %638 = vmatpush.msra.mxu0 %v612
        %639 = vmatpush.msra.mxu0 %v611
        %640 = vmatpush.msra.mxu0 %v610
        %641 = vmatpush.msra.mxu0 %v609
        %642 = vmatpush.msra.mxu0 %v608
        %643 = vmatpush.msra.mxu0 %v607
        %644 = vmatpush.msra.mxu0 %v606
        %645 = vmatpush.msra.mxu0 %v605
        %646 = vmatpush.msra.mxu0 %v604
        %647 = vmatpush.msra.mxu0 %v603
        %648 = vmatpush.msra.mxu0 %v602
        %649 = vmatmul.f32.gmra.mxu0 %v600
        %v650 = vpop.f32.mrf.mxu0
        %v651 = vadd.f32 %v628, %v650
        %652 = vdwg.mxu0
        %653 = vmatpush.msra.mxu0 0.0
        %654 = vmatpush.msra.mxu0 0.0
        %655 = vmatpush.msra.mxu0 0.0
        %656 = vmatpush.msra.mxu0 0.0
        %657 = vmatpush.msra.mxu0 0.0
        %658 = vmatpush.msra.mxu0 0.0
        %659 = vmatpush.msra.mxu0 0.0
        %660 = vmatpush.msra.mxu0 0.0
        %661 = vmatpush.msra.mxu0 %v625
        %662 = vmatpush.msra.mxu0 %v624
        %663 = vmatpush.msra.mxu0 %v623
        %664 = vmatpush.msra.mxu0 %v622
        %665 = vmatpush.msra.mxu0 %v621
        %666 = vmatpush.msra.mxu0 %v620
        %667 = vmatpush.msra.mxu0 %v619
        %668 = vmatpush.msra.mxu0 %v618
        %669 = vmatmul.f32.gmra.mxu0 %v631
        %v670 = vpop.f32.mrf.mxu0
        %v671 = vadd.f32 %v651, %v670
        %672 = vdwg.mxu0
        %673 = vst [vmem:[%s264] sm:$0xff] %v671
        %s674 = sand.u32 %s133, 1
        %s675 = scalar_lea.sflag [#allocation6], %s674
        %s676 = sand.u32 %s133, 1
        %s677 = smul.addr %s676, 8
        %s678 = scalar_lea.vmem [#allocation10], %s677
        // Predicated region
        $region53: #{tpu_custom_call.1} parent=35 // pred_check
          %p679 = pneg %p143
        $region54: #{tpu_custom_call.1} parent=35 // pred_check_branch
          %681 = sbr.rel (%p679) target = $region56
        $region55: #{tpu_custom_call.1} parent=35 // pred_region
          %683 = vsyncadd %s675, 0
          %s684 = smul.addr %s26, 2
          %s685 = sadd.s32 %s27, %s684
          %s686 = smul.addr %s685, 8
          %s687 = scalar_lea.hbm %s4, %s686
          %s689 = sshll.u32 %s678, 4
          %s690 = int_to_ptr.vmem [resolvable:$true] %s689
          %s691 = sshll.u32 %s687, 4
          %s692 = int_to_ptr.hbm [resolvable:$true] %s691
          %694 = dma.vmem_to_hbm [thread:$0]  %s690, 128, %s692, %s675
        $region56: #{tpu_custom_call.1} parent=35 // pred_fallthru
          _
      $region36: #{tpu_custom_call.1} parent=5 // pred_fallthru
        _
      %p695 = scmp.le.s32.totalorder 2, %s17
      // Predicated region
      $region57: #{tpu_custom_call.1} parent=5 // pred_check
        %p696 = pneg %p695
      $region58: #{tpu_custom_call.1} parent=5 // pred_check_branch
        %698 = sbr.rel (%p696) target = $region60
      $region59: #{tpu_custom_call.1} parent=5 // pred_region
        %s699 = ssub.s32 %s17, 2
        // Predicated region
        $region61: #{tpu_custom_call.1} parent=59 // pred_check
          %p700 = pneg %p149
        $region62: #{tpu_custom_call.1} parent=59 // pred_check_branch
          %702 = sbr.rel (%p700) target = $region64
        $region63: #{tpu_custom_call.1} parent=59 // pred_region
          %s703 = sand.u32 %s134, 1
          %s704 = scalar_lea.sflag [#allocation6], %s703
          %s705 = sand.u32 %s134, 1
          %s706 = smul.addr %s705, 8
          %s707 = scalar_lea.vmem [#allocation10], %s706
          %709 = dma.done %s704, 128
        $region64: #{tpu_custom_call.1} parent=59 // pred_fallthru
          _
      $region60: #{tpu_custom_call.1} parent=5 // pred_fallthru
        _
    $region6: #{tpu_custom_call.1} parent=1 // loop_footer
      %s21 = sadd.s32 1, %s17
    $region7: #{tpu_custom_call.1} parent=1 // loop_footer_branch
      %16 = sbr.rel target = $region3
    $region8: #{tpu_custom_call.1} parent=1 // loop_exit
      _
    %710 = vsyncpa [#allocation5], 1
    %s711 = scalar_lea.sflag [#allocation5], 1
    %712 = vsyncpa %s711, 1
    %713 = vsyncpa [#allocation8], 1
    %714 = vsyncpa [#allocation6], 1
    %s715 = scalar_lea.sflag [#allocation6], 1
    %716 = vsyncpa %s715, 1

</llo_original>
